<compile_context>
chip_gen: v7x
topology: tpu7x:2x2x1
jax: 0.10.0
libtpu: 0.0.40
codegen_flags: <defaults>
</compile_context>

<pallas_src>
import jax
import jax.numpy as jnp
from jax import lax
from jax.experimental import pallas as pl
from jax.experimental.pallas import tpu as pltpu


# ---------------------------------------------------------------------------
# Layer sizes (from the PyTorch module) and packed-slab layout (rows x 256
# bf16 lanes).
# ---------------------------------------------------------------------------
IN_F, H1, H2, N_ACT, H3 = 320, 160, 80, 5, 160
W_LANES = 256          # slab lane width (widest block needs 165 lanes)
OUT_LANES = 128        # lane-dense output slab

R_W1 = 0               # rows   0:320 : w1 [320,160]   in lanes 0:160
R_W2 = R_W1 + IN_F     # rows 320:480 : w2 [160, 80]   in lanes 0:80
R_WH = R_W2 + H1       # rows 480:560 : [wa|w3] [80,165] in lanes 0:165
R_MISC = R_WH + H2     # rows 560:568 : misc block (one aligned 8-row tile)
MISC_WC = 0            #   row 560: wc.T in lanes 5:165, bc in lane 165
MISC_B1 = 1            #   row 561: b1 in lanes 0:160
MISC_B2 = 2            #   row 562: b2 in lanes 0:80
MISC_BH = 3            #   row 563: ba in lanes 0:5, b3 in lanes 5:165, 1.0 in lane 165
N_ROWS = R_MISC + 8    # 568 (multiple of 8)


def _actor_critic_kernel(x_ref, w_ref, out_ref):
    x = x_ref[...]                                    # [B, 320] f32
    B = x.shape[0]

    # One aligned 8-row load of the misc block, cast once to f32 for the VPU
    # element-wise paths (mandatory on v5e: no bf16 VPU/EUP).
    misc = w_ref[R_MISC:R_MISC + 8, :].astype(jnp.float32)     # [8, 256]
    wc_bc = misc[MISC_WC:MISC_WC + 1, :]                       # wc row (+bc @ lane 165)
    b1 = misc[MISC_B1:MISC_B1 + 1, :]
    b2 = misc[MISC_B2:MISC_B2 + 1, :]
    bh = misc[MISC_BH:MISC_BH + 1, :]

    # F.normalize(x, dim=0): L2-normalize each column over the batch axis.
    # torch clamps the norm at 1e-12  <=>  clamp sum-of-squares at 1e-24.
    sumsq = jnp.sum(x * x, axis=0, keepdims=True)
    xn = x * lax.rsqrt(jnp.maximum(sumsq, 1e-24))

    # y = relu(l1(x))  -> [B, 256], lanes 160:256 are exactly 0.
    # (Weights are bf16 in VMEM; JAX upcasts them for the f32-accumulate dot.)
    y1 = jnp.dot(xn, w_ref[R_W1:R_W1 + IN_F, :],
                 preferred_element_type=jnp.float32)
    y1 = jnp.maximum(y1 + b1, 0.0)

    # y = relu(l2(y)): contract only the 160 live lanes / 160 weight rows.
    y2 = jnp.dot(y1[:, :H1], w_ref[R_W2:R_W2 + H1, :],
                 preferred_element_type=jnp.float32)
    y2 = jnp.maximum(y2 + b2, 0.0)

    # Fused head (K=80): lanes 0:5 = actor logits, 5:165 = l3 pre-activation,
    # lane 165 == 1.0 (constant baked into the head-bias row, pairs with bc).
    head = jnp.dot(y2[:, :H2], w_ref[R_WH:R_WH + H2, :],
                   preferred_element_type=jnp.float32)
    head = head + bh

    # critic = tanh(critic_lin1(relu(l3(y)))): wc row is zero in lanes 0:5 and
    # 166:, and carries bc at lane 165 (paired with the relu'd 1.0), so the
    # lane reduction already includes the critic bias.  Pure VPU + reduce.
    c = jnp.maximum(head, 0.0)                        # [B, 256]
    v = jnp.sum(c * wc_bc, axis=-1, keepdims=True)    # [B, 1], includes bc
    critic = jnp.tanh(v)                              # [B, 1]

    # actor = log_softmax(actor_lin1(y), dim=0) (reduce over the batch axis).
    # Computing the lse over the full first lane-vreg (128 lanes) is the same
    # vreg work as over 5 masked lanes; lanes >= 5 are discarded below.
    h128 = head[:, :OUT_LANES]                        # [B, 128]
    m = jnp.max(h128, axis=0, keepdims=True)
    lse = jnp.log(jnp.sum(jnp.exp(h128 - m), axis=0, keepdims=True)) + m
    actor_full = h128 - lse                           # lanes 0:5 = actor

    # Single-vreg epilogue: lane<5 -> actor, lane==5 -> critic, else 0.
    lane = lax.broadcasted_iota(jnp.int32, (B, OUT_LANES), 1)
    out_ref[...] = jnp.where(lane < N_ACT, actor_full,
                             jnp.where(lane == N_ACT, critic, 0.0))


def pack_params(params):
    """Pack the five (W [in,out], b [1,out]) pairs into one [568,256] bf16 slab."""
    (w1, b1), (w2, b2), (wa, ba), (w3, b3), (wc, bc) = params
    W = jnp.zeros((N_ROWS, W_LANES), jnp.float32)
    W = W.at[R_W1:R_W1 + IN_F, 0:H1].set(w1)
    W = W.at[R_W2:R_W2 + H1, 0:H2].set(w2)
    W = W.at[R_WH:R_WH + H2, 0:N_ACT].set(wa)
    W = W.at[R_WH:R_WH + H2, N_ACT:N_ACT + H3].set(w3)
    W = W.at[R_MISC + MISC_WC, N_ACT:N_ACT + H3].set(wc[:, 0])   # wc.T, shifted by 5
    W = W.at[R_MISC + MISC_WC, N_ACT + H3].set(bc[0, 0])         # bc at lane 165
    W = W.at[R_MISC + MISC_B1, 0:H1].set(b1[0])
    W = W.at[R_MISC + MISC_B2, 0:H2].set(b2[0])
    W = W.at[R_MISC + MISC_BH, 0:N_ACT].set(ba[0])
    W = W.at[R_MISC + MISC_BH, N_ACT:N_ACT + H3].set(b3[0])
    W = W.at[R_MISC + MISC_BH, N_ACT + H3].set(1.0)              # pairs with bc
    return W.astype(jnp.bfloat16)


def actor_critic_forward(x, packed_w):
    """x: [B, 320] f32, packed_w: [568, 256] bf16 -> (actor [B,5], critic [B,1])."""
    B = x.shape[0]
    vmem = pl.BlockSpec(memory_space=pltpu.MemorySpace.VMEM)
    out = pl.pallas_call(
        _actor_critic_kernel,
        out_shape=jax.ShapeDtypeStruct((B, OUT_LANES), jnp.float32),
        in_specs=[vmem, vmem],
        out_specs=vmem,
        # Explicit headroom above v5e's 16 MiB default scoped-VMEM limit so
        # moderately larger batches don't hit the ceiling (safe on all gens).
        compiler_params=pltpu.CompilerParams(vmem_limit_bytes=32 * 1024 * 1024),
    )(x, packed_w)
    return out[:, 0:N_ACT], out[:, N_ACT:N_ACT + 1]


# ---------------------------------------------------------------------------
# Parameter construction + pure-JAX references (mirror the PyTorch module).
# ---------------------------------------------------------------------------
def _init_linear(key, in_f, out_f):
    kw, kb = jax.random.split(key)
    bound = 1.0 / jnp.sqrt(jnp.float32(in_f))
    w = jax.random.uniform(kw, (in_f, out_f), jnp.float32, -bound, bound)
    b = jax.random.uniform(kb, (1, out_f), jnp.float32, -bound, bound)
    return w, b


def make_params(key):
    k1, k2, k3, k4, k5 = jax.random.split(key, 5)
    return (
        _init_linear(k1, 320, 160),   # l1
        _init_linear(k2, 160, 80),    # l2
        _init_linear(k3, 80, 5),      # actor_lin1
        _init_linear(k4, 80, 160),    # l3
        _init_linear(k5, 160, 1),     # critic_lin1
    )


def _reference_forward(x, params):
    (w1, b1), (w2, b2), (wa, ba), (w3, b3), (wc, bc) = params
    xn = x / jnp.maximum(jnp.sqrt(jnp.sum(x * x, axis=0, keepdims=True)), 1e-12)
    y = jax.nn.relu(xn @ w1 + b1)
    y = jax.nn.relu(y @ w2 + b2)
    actor = jax.nn.log_softmax(y @ wa + ba, axis=0)
    c = jax.nn.relu(y @ w3 + b3)
    critic = jnp.tanh(c @ wc + bc)
    return actor, critic


def _quantize_params(params):
    """Round params through bf16 exactly like the packed slab does."""
    q = lambda a: a.astype(jnp.bfloat16).astype(jnp.float32)
    return tuple((q(w), q(b)) for (w, b) in params)


if __name__ == "__main__":
    key = jax.random.PRNGKey(0)
    kx, kp = jax.random.split(key)

    B = 2
    x = jax.random.normal(kx, (B, 320), dtype=jnp.float32)
    params = make_params(kp)
    packed = pack_params(params)          # one-time host-side packing (bf16)

    actor, critic = actor_critic_forward(x, packed)
    actor = jax.block_until_ready(actor)
    critic = jax.block_until_ready(critic)
    assert actor.shape == (B, 5) and critic.shape == (B, 1)

    # Tight check: same bf16-rounded weights, f32 math (kernel-math correctness).
    q_actor, q_critic = _reference_forward(x, _quantize_params(params))
    assert jnp.allclose(actor, q_actor, atol=1e-5, rtol=1e-5)
    assert jnp.allclose(critic, q_critic, atol=1e-5, rtol=1e-5)

    # Loose sanity check vs the full-f32 module (bounds bf16 weight quantization).
    f_actor, f_critic = _reference_forward(x, params)
    assert jnp.allclose(actor, f_actor, atol=5e-2, rtol=5e-2)
    assert jnp.allclose(critic, f_critic, atol=5e-2, rtol=5e-2)

    print("KERNEL_OK")
</pallas_src>

<mosaic_0001>
module attributes {stable_mosaic.version = 11 : i64} {
  func.func @_actor_critic_kernel(%arg0: memref<2x320xf32, #tpu.memory_space<vmem>>, %arg1: memref<568x256xbf16, #tpu.memory_space<vmem>>, %arg2: memref<2x128xf32, #tpu.memory_space<vmem>>) attributes {dimension_semantics = [], scalar_prefetch = 0 : i64, scratch_operands = 0 : i64, tpu.core_type = #tpu.core_type<tc>} {
    %c0 = arith.constant 0 : index
    %c0_0 = arith.constant 0 : index
    %0 = vector.load %arg0[%c0, %c0_0] : memref<2x320xf32, #tpu.memory_space<vmem>>, vector<2x320xf32>
    %c560 = arith.constant 560 : index
    %c0_1 = arith.constant 0 : index
    %1 = vector.load %arg1[%c560, %c0_1] : memref<568x256xbf16, #tpu.memory_space<vmem>>, vector<8x256xbf16>
    %2 = arith.extf %1 : vector<8x256xbf16> to vector<8x256xf32>
    %3 = vector.extract_strided_slice %2 {offsets = [0, 0], sizes = [1, 256], strides = [1, 1]} : vector<8x256xf32> to vector<1x256xf32>
    %4 = vector.extract_strided_slice %2 {offsets = [1, 0], sizes = [1, 256], strides = [1, 1]} : vector<8x256xf32> to vector<1x256xf32>
    %5 = vector.extract_strided_slice %2 {offsets = [2, 0], sizes = [1, 256], strides = [1, 1]} : vector<8x256xf32> to vector<1x256xf32>
    %6 = vector.extract_strided_slice %2 {offsets = [3, 0], sizes = [1, 256], strides = [1, 1]} : vector<8x256xf32> to vector<1x256xf32>
    %7 = arith.mulf %0, %0 : vector<2x320xf32>
    %cst = arith.constant dense<0.000000e+00> : vector<320xf32>
    %8 = vector.multi_reduction <add>, %7, %cst [0] : vector<2x320xf32> to vector<320xf32>
    %9 = vector.shape_cast %8 : vector<320xf32> to vector<1x320xf32>
    %cst_2 = arith.constant 1.000000e-24 : f32
    %10 = vector.broadcast %cst_2 : f32 to vector<1x320xf32>
    %11 = arith.maximumf %9, %10 : vector<1x320xf32>
    %12 = math.rsqrt %11 : vector<1x320xf32>
    %13 = vector.broadcast %12 : vector<1x320xf32> to vector<2x320xf32>
    %14 = arith.mulf %0, %13 : vector<2x320xf32>
    %c0_3 = arith.constant 0 : index
    %c0_4 = arith.constant 0 : index
    %15 = vector.load %arg1[%c0_3, %c0_4] : memref<568x256xbf16, #tpu.memory_space<vmem>>, vector<320x256xbf16>
    %cst_5 = arith.constant dense<0.000000e+00> : vector<2x256xf32>
    %16 = tpu.matmul %14, %15, %cst_5 {dimension_numbers = #tpu.dot_dimension_numbers<[1], [0], [0], [1], [0, 0, 1, 1], [], []>} : vector<2x320xf32>, vector<320x256xbf16>, vector<2x256xf32> -> vector<2x256xf32>
    %17 = vector.broadcast %4 : vector<1x256xf32> to vector<2x256xf32>
    %18 = arith.addf %16, %17 : vector<2x256xf32>
    %cst_6 = arith.constant 0.000000e+00 : f32
    %19 = vector.broadcast %cst_6 : f32 to vector<2x256xf32>
    %20 = arith.maximumf %18, %19 : vector<2x256xf32>
    %21 = vector.extract_strided_slice %20 {offsets = [0, 0], sizes = [2, 160], strides = [1, 1]} : vector<2x256xf32> to vector<2x160xf32>
    %c320 = arith.constant 320 : index
    %c0_7 = arith.constant 0 : index
    %22 = vector.load %arg1[%c320, %c0_7] : memref<568x256xbf16, #tpu.memory_space<vmem>>, vector<160x256xbf16>
    %cst_8 = arith.constant dense<0.000000e+00> : vector<2x256xf32>
    %23 = tpu.matmul %21, %22, %cst_8 {dimension_numbers = #tpu.dot_dimension_numbers<[1], [0], [0], [1], [0, 0, 1, 1], [], []>} : vector<2x160xf32>, vector<160x256xbf16>, vector<2x256xf32> -> vector<2x256xf32>
    %24 = vector.broadcast %5 : vector<1x256xf32> to vector<2x256xf32>
    %25 = arith.addf %23, %24 : vector<2x256xf32>
    %cst_9 = arith.constant 0.000000e+00 : f32
    %26 = vector.broadcast %cst_9 : f32 to vector<2x256xf32>
    %27 = arith.maximumf %25, %26 : vector<2x256xf32>
    %28 = vector.extract_strided_slice %27 {offsets = [0, 0], sizes = [2, 80], strides = [1, 1]} : vector<2x256xf32> to vector<2x80xf32>
    %c480 = arith.constant 480 : index
    %c0_10 = arith.constant 0 : index
    %29 = vector.load %arg1[%c480, %c0_10] : memref<568x256xbf16, #tpu.memory_space<vmem>>, vector<80x256xbf16>
    %cst_11 = arith.constant dense<0.000000e+00> : vector<2x256xf32>
    %30 = tpu.matmul %28, %29, %cst_11 {dimension_numbers = #tpu.dot_dimension_numbers<[1], [0], [0], [1], [0, 0, 1, 1], [], []>} : vector<2x80xf32>, vector<80x256xbf16>, vector<2x256xf32> -> vector<2x256xf32>
    %31 = vector.broadcast %6 : vector<1x256xf32> to vector<2x256xf32>
    %32 = arith.addf %30, %31 : vector<2x256xf32>
    %cst_12 = arith.constant 0.000000e+00 : f32
    %33 = vector.broadcast %cst_12 : f32 to vector<2x256xf32>
    %34 = arith.maximumf %32, %33 : vector<2x256xf32>
    %35 = vector.broadcast %3 : vector<1x256xf32> to vector<2x256xf32>
    %36 = arith.mulf %34, %35 : vector<2x256xf32>
    %cst_13 = arith.constant dense<0.000000e+00> : vector<2xf32>
    %37 = vector.multi_reduction <add>, %36, %cst_13 [1] : vector<2x256xf32> to vector<2xf32>
    %38 = vector.shape_cast %37 : vector<2xf32> to vector<2x1xf32>
    %39 = math.tanh %38 : vector<2x1xf32>
    %40 = vector.extract_strided_slice %32 {offsets = [0, 0], sizes = [2, 128], strides = [1, 1]} : vector<2x256xf32> to vector<2x128xf32>
    %cst_14 = arith.constant dense<0xFF800000> : vector<128xf32>
    %41 = vector.multi_reduction <maximumf>, %40, %cst_14 [0] : vector<2x128xf32> to vector<128xf32>
    %42 = vector.shape_cast %41 : vector<128xf32> to vector<1x128xf32>
    %43 = vector.broadcast %42 : vector<1x128xf32> to vector<2x128xf32>
    %44 = arith.subf %40, %43 : vector<2x128xf32>
    %45 = math.exp %44 : vector<2x128xf32>
    %cst_15 = arith.constant dense<0.000000e+00> : vector<128xf32>
    %46 = vector.multi_reduction <add>, %45, %cst_15 [0] : vector<2x128xf32> to vector<128xf32>
    %47 = vector.shape_cast %46 : vector<128xf32> to vector<1x128xf32>
    %48 = math.log %47 : vector<1x128xf32>
    %49 = arith.addf %48, %42 : vector<1x128xf32>
    %50 = vector.broadcast %49 : vector<1x128xf32> to vector<2x128xf32>
    %51 = arith.subf %40, %50 : vector<2x128xf32>
    %52 = tpu.iota {dimensions = array<i32: 1>} : vector<2x128xi32>
    %c5_i32 = arith.constant 5 : i32
    %53 = vector.broadcast %c5_i32 : i32 to vector<2x128xi32>
    %54 = arith.cmpi slt, %52, %53 : vector<2x128xi32>
    %c5_i32_16 = arith.constant 5 : i32
    %55 = vector.broadcast %c5_i32_16 : i32 to vector<2x128xi32>
    %56 = arith.cmpi eq, %52, %55 : vector<2x128xi32>
    %cst_17 = arith.constant 0.000000e+00 : f32
    %57 = vector.shape_cast %39 : vector<2x1xf32> to vector<2x1xf32>
    %58 = vector.broadcast %57 : vector<2x1xf32> to vector<2x128xf32>
    %59 = vector.broadcast %cst_17 : f32 to vector<2x128xf32>
    %60 = arith.select %56, %58, %59 : vector<2x128xi1>, vector<2x128xf32>
    %61 = arith.select %54, %51, %60 : vector<2x128xi1>, vector<2x128xf32>
    %c0_18 = arith.constant 0 : index
    %c0_19 = arith.constant 0 : index
    %62 = vector.load %arg2[%c0_18, %c0_19] : memref<2x128xf32, #tpu.memory_space<vmem>>, vector<2x128xf32>
    tpu.vector_store %arg2[%c0_18, %c0_19], %61 {strides = array<i32>} : memref<2x128xf32, #tpu.memory_space<vmem>>, vector<2x128xf32>,
    return
  }
}

</mosaic_0001>

<llo_original>
// kernel: tpu_custom_call.1
$region0: #{tpu_custom_call.1}
  #allocation0 [shape = 'u32[]', space=smem, size = 0x4, offset = 0x4, fixed_abs, tag = 'smem constant byte address 0x4 - core index']
  #allocation1 [shape = 'u32[144,128]{1,0:T(1,128)}', space=vmem, size = 0x12000, scoped, tag = 'internal scratch']
  %s0 = inlined_call_operand.hbm [shape: f32[2,320], index: 0, kind: input, shape index: {}]
  %s1 = inlined_call_operand.hbm [shape: bf16[568,256], index: 1, kind: input, shape index: {}]
  %s2 = inlined_call_operand.hbm [shape: f32[2,128], index: 2, kind: output, shape index: {}]
  %s3 = sld [smem:[#allocation0]]
  $region26: #{tpu_custom_call.1} parent=0
    _
  %s5 = ssub.s32 1, %s3
  %s6 = scalar_select 0, %s5, %s3
  $region1: #{tpu_custom_call.1} parent=0
    #allocation2 [shape = 'u8[3072]{0}', space=vmem, size = 0xc00, scoped, tag = 'input window, operand 0, single buffered']
    #allocation3 [shape = 's32[1]{0}', space=sflag, size = 0x4, scoped, tag = 'scoped memory for tpu_custom_call.1']
    #allocation4 [shape = 's32[1]{0}', space=sflag, size = 0x4, scoped, tag = 'scoped memory for tpu_custom_call.1']
    #allocation5 [shape = 'u8[290816]{0}', space=vmem, size = 0x47000, scoped, tag = 'input window, operand 1, single buffered']
    #allocation6 [shape = 's32[1]{0}', space=sflag, size = 0x4, scoped, tag = 'scoped memory for tpu_custom_call.1']
    #allocation7 [shape = 'u8[1024]{0}', space=vmem, size = 0x400, scoped, tag = 'output window, operand 0, single buffered']
    %7 = vsyncpa [#allocation3], 0
    %8 = vsyncpa [#allocation6], 0
    %9 = vsyncpa [#allocation4], 0
    // Predicated region
    $region2: #{tpu_custom_call.1} parent=1 // pred_check
      _
    $region3: #{tpu_custom_call.1} parent=1 // pred_check_branch
      %11 = sbr.rel (0) target = $region5
    $region4: #{tpu_custom_call.1} parent=1 // pred_region
      %s13 = ssub.s32 96, 96
      %14 = vsyncadd [#allocation3], %s13
      %s16 = sshll.u32 [#allocation2], 4
      %s17 = int_to_ptr.vmem [resolvable:$true] %s16
      %19 = dma.hbm_to_vmem [thread:$0]  %s0, 96, %s17, [#allocation3]
    $region5: #{tpu_custom_call.1} parent=1 // pred_fallthru
      _
    // Predicated region
    $region6: #{tpu_custom_call.1} parent=1 // pred_check
      _
    $region7: #{tpu_custom_call.1} parent=1 // pred_check_branch
      %21 = sbr.rel (0) target = $region9
    $region8: #{tpu_custom_call.1} parent=1 // pred_region
      %s23 = ssub.s32 9088, 9088
      %24 = vsyncadd [#allocation6], %s23
      %s25 = sshll.u32 [#allocation5], 4
      %s26 = int_to_ptr.vmem [resolvable:$true] %s25
      %31 = dma.hbm_to_vmem [thread:$0]  %s1, 9088, %s26, [#allocation6], 128, 128, 8
    $region9: #{tpu_custom_call.1} parent=1 // pred_fallthru
      _
    // Predicated region
    $region10: #{tpu_custom_call.1} parent=1 // pred_check
      _
    $region11: #{tpu_custom_call.1} parent=1 // pred_check_branch
      %33 = sbr.rel (0) target = $region13
    $region12: #{tpu_custom_call.1} parent=1 // pred_region
      %34 = dma.done [#allocation3], 96
    $region13: #{tpu_custom_call.1} parent=1 // pred_fallthru
      _
    // Predicated region
    $region14: #{tpu_custom_call.1} parent=1 // pred_check
      _
    $region15: #{tpu_custom_call.1} parent=1 // pred_check_branch
      %36 = sbr.rel (0) target = $region17
    $region16: #{tpu_custom_call.1} parent=1 // pred_region
      %37 = dma.done [#allocation6], 9088
    $region17: #{tpu_custom_call.1} parent=1 // pred_fallthru
      _
    %v39 = vld [vmem:[#allocation2] sm:$0x3f]
    %v40 = vld [vmem:[#allocation5 + $0x230] sm:$0xff]
    %v41 = vunpack.c.l.bf16 %v40
    %v42 = vunpack.c.h.bf16 %v40
    %v43 = vmul.f32 %v39, %v39
    %v45 = vcombine.high %v43, %v43
    %v47 = vunpack.c.l.s4 1983009808
    %v48 = vunpack.c.0.s8 %v47
    %v49 = vlaneseq
    %v50 = vshrl.u32 %v49, 7
    %v51 = vsub.s32 %v48, %v50
    %v52 = vrot.slane %v43, %v51
    %v54 = vunpack.c.l.s4 1983009808
    %v55 = vunpack.c.0.s8 %v54
    %v56 = vlaneseq
    %v57 = vshrl.u32 %v56, 7
    %v58 = vsub.s32 %v55, %v57
    %v59 = vrot.slane %v45, %v58
    %v60 = vcombine.high %v52, %v52
    %vm64 = vcmask 1041408
    %v65 = vsel %vm64, %v52, 0.0
    %v66 = vrot.slane %v65, 4
    %v67 = vadd.f32 %v65, %v66
    %v68 = vrot.slane %v67, 2
    %v69 = vadd.f32 %v67, %v68
    %v70 = vrot.slane %v69, 1
    %v71 = vadd.f32 %v69, %v70
    %v72 = vsel %vm64, %v60, 0.0
    %v73 = vrot.slane %v72, 4
    %v74 = vadd.f32 %v72, %v73
    %v75 = vrot.slane %v74, 2
    %v76 = vadd.f32 %v74, %v75
    %v77 = vrot.slane %v76, 1
    %v78 = vadd.f32 %v76, %v77
    %vm79 = vcmask 517120
    %v80 = vsel %vm79, %v59, 0.0
    %v81 = vrot.slane %v80, 4
    %v82 = vadd.f32 %v80, %v81
    %v83 = vrot.slane %v82, 2
    %v84 = vadd.f32 %v82, %v83
    %v85 = vrot.slane %v84, 1
    %v86 = vadd.f32 %v84, %v85
    %v87 = vmax.f32 %v71, 1e-24
    %v88 = vmax.f32 %v78, 1e-24
    %v89 = vmax.f32 %v86, 1e-24
    %v90 = vrsqrt.pop %v87
    %v91 = vrsqrt.pop %v88
    %v92 = vrsqrt.pop %v89
    %v96 = vcombine.low %v90, %v91
    %v98 = vunpack.c.l.s4 1983009808
    %v99 = vunpack.c.0.s8 %v98
    %v100 = vlaneseq
    %v101 = vshrl.u32 %v100, 7
    %v102 = vsub.s32 %v99, %v101
    %v103 = vrot.slane %v96, %v102
    %v105 = vunpack.c.l.s4 1983009808
    %v106 = vunpack.c.0.s8 %v105
    %v107 = vlaneseq
    %v108 = vshrl.u32 %v107, 7
    %v109 = vsub.s32 %v106, %v108
    %v110 = vrot.slane %v92, %v109
    %v111 = vcombine.low %v103, %v110
    %v113 = vmul.f32 %v39, %v111
    %v114 = vld [vmem:[#allocation5] sm:$0xff]
    %v115 = vld [vmem:[#allocation5 + $0x8] sm:$0xff]
    %v116 = vld [vmem:[#allocation5 + $0x10] sm:$0xff]
    %v117 = vld [vmem:[#allocation5 + $0x18] sm:$0xff]
    %v118 = vld [vmem:[#allocation5 + $0x20] sm:$0xff]
    %v119 = vld [vmem:[#allocation5 + $0x28] sm:$0xff]
    %v120 = vld [vmem:[#allocation5 + $0x30] sm:$0xff]
    %v121 = vld [vmem:[#allocation5 + $0x38] sm:$0xff]
    %v122 = vld [vmem:[#allocation5 + $0x40] sm:$0xff]
    %v123 = vld [vmem:[#allocation5 + $0x48] sm:$0xff]
    %v124 = vld [vmem:[#allocation5 + $0x50] sm:$0xff]
    %v125 = vld [vmem:[#allocation5 + $0x58] sm:$0xff]
    %v126 = vld [vmem:[#allocation5 + $0x60] sm:$0xff]
    %v127 = vld [vmem:[#allocation5 + $0x68] sm:$0xff]
    %v128 = vld [vmem:[#allocation5 + $0x70] sm:$0xff]
    %v129 = vld [vmem:[#allocation5 + $0x78] sm:$0xff]
    %v130 = vld [vmem:[#allocation5 + $0x80] sm:$0xff]
    %v131 = vld [vmem:[#allocation5 + $0x88] sm:$0xff]
    %v132 = vld [vmem:[#allocation5 + $0x90] sm:$0xff]
    %v133 = vld [vmem:[#allocation5 + $0x98] sm:$0xff]
    %v134 = vld [vmem:[#allocation5 + $0xa0] sm:$0xff]
    %v135 = vld [vmem:[#allocation5 + $0xa8] sm:$0xff]
    %v136 = vld [vmem:[#allocation5 + $0xb0] sm:$0xff]
    %v137 = vld [vmem:[#allocation5 + $0xb8] sm:$0xff]
    %v138 = vld [vmem:[#allocation5 + $0xc0] sm:$0xff]
    %v139 = vld [vmem:[#allocation5 + $0xc8] sm:$0xff]
    %v140 = vld [vmem:[#allocation5 + $0xd0] sm:$0xff]
    %v141 = vld [vmem:[#allocation5 + $0xd8] sm:$0xff]
    %v142 = vld [vmem:[#allocation5 + $0xe0] sm:$0xff]
    %v143 = vld [vmem:[#allocation5 + $0xe8] sm:$0xff]
    %v144 = vld [vmem:[#allocation5 + $0xf0] sm:$0xff]
    %v145 = vld [vmem:[#allocation5 + $0xf8] sm:$0xff]
    %v146 = vld [vmem:[#allocation5 + $0x100] sm:$0xff]
    %v147 = vld [vmem:[#allocation5 + $0x108] sm:$0xff]
    %v148 = vld [vmem:[#allocation5 + $0x110] sm:$0xff]
    %v149 = vld [vmem:[#allocation5 + $0x118] sm:$0xff]
    %v150 = vld [vmem:[#allocation5 + $0x120] sm:$0xff]
    %v151 = vld [vmem:[#allocation5 + $0x128] sm:$0xff]
    %v152 = vld [vmem:[#allocation5 + $0x130] sm:$0xff]
    %v153 = vld [vmem:[#allocation5 + $0x138] sm:$0xff]
    %v154 = vlaneseq
    %v155 = vshrl.u32 %v154, 7
    %v156 = vsub.s32 1, %v155
    %v157 = vrot.slane %v41, %v156
    %v158 = vlaneseq
    %v159 = vshrl.u32 %v158, 7
    %v160 = vsub.s32 1, %v159
    %v161 = vrot.slane %v42, %v160
    %v163 = vcombine.high %v113, %v113
    %v165 = vunpack.c.l.s4 1983009808
    %v166 = vunpack.c.0.s8 %v165
    %v167 = vlaneseq
    %v168 = vshrl.u32 %v167, 7
    %v169 = vsub.s32 %v166, %v168
    %v170 = vrot.slane %v113, %v169
    %v172 = vunpack.c.l.s4 1983009808
    %v173 = vunpack.c.0.s8 %v172
    %v174 = vlaneseq
    %v175 = vshrl.u32 %v174, 7
    %v176 = vsub.s32 %v173, %v175
    %v177 = vrot.slane %v163, %v176
    %v178 = vcombine.high %v170, %v170
    %v221 = vunpack.c.l.b16 %v114
    %v222 = vunpack.c.h.b16 %v114
    %v223 = vunpack.c.l.b16 %v115
    %v224 = vunpack.c.h.b16 %v115
    %v225 = vunpack.c.l.b16 %v116
    %v226 = vunpack.c.h.b16 %v116
    %v227 = vunpack.c.l.b16 %v117
    %v228 = vunpack.c.h.b16 %v117
    %v229 = vunpack.c.l.b16 %v118
    %v230 = vunpack.c.h.b16 %v118
    %v231 = vunpack.c.l.b16 %v119
    %v232 = vunpack.c.h.b16 %v119
    %v233 = vunpack.c.l.b16 %v120
    %v234 = vunpack.c.h.b16 %v120
    %v235 = vunpack.c.l.b16 %v121
    %v236 = vunpack.c.h.b16 %v121
    %v237 = vunpack.c.l.b16 %v122
    %v238 = vunpack.c.h.b16 %v122
    %v239 = vunpack.c.l.b16 %v123
    %v240 = vunpack.c.h.b16 %v123
    %v241 = vunpack.c.l.b16 %v124
    %v242 = vunpack.c.h.b16 %v124
    %v243 = vunpack.c.l.b16 %v125
    %v244 = vunpack.c.h.b16 %v125
    %v245 = vunpack.c.l.b16 %v126
    %v246 = vunpack.c.h.b16 %v126
    %v247 = vunpack.c.l.b16 %v127
    %v248 = vunpack.c.h.b16 %v127
    %v249 = vunpack.c.l.b16 %v128
    %v250 = vunpack.c.h.b16 %v128
    %v251 = vunpack.c.l.b16 %v129
    %v252 = vunpack.c.h.b16 %v129
    %v253 = vunpack.c.l.b16 %v130
    %v254 = vunpack.c.h.b16 %v130
    %v255 = vunpack.c.l.b16 %v131
    %v256 = vunpack.c.h.b16 %v131
    %v257 = vunpack.c.l.b16 %v132
    %v258 = vunpack.c.h.b16 %v132
    %v259 = vunpack.c.l.b16 %v133
    %v260 = vunpack.c.h.b16 %v133
    %v261 = vunpack.c.l.b16 %v134
    %v262 = vunpack.c.h.b16 %v134
    %v263 = vunpack.c.l.b16 %v135
    %v264 = vunpack.c.h.b16 %v135
    %v265 = vunpack.c.l.b16 %v136
    %v266 = vunpack.c.h.b16 %v136
    %v267 = vunpack.c.l.b16 %v137
    %v268 = vunpack.c.h.b16 %v137
    %v269 = vunpack.c.l.b16 %v138
    %v270 = vunpack.c.h.b16 %v138
    %v271 = vunpack.c.l.b16 %v139
    %v272 = vunpack.c.h.b16 %v139
    %v273 = vunpack.c.l.b16 %v140
    %v274 = vunpack.c.h.b16 %v140
    %v275 = vunpack.c.l.b16 %v141
    %v276 = vunpack.c.h.b16 %v141
    %v277 = vunpack.c.l.b16 %v142
    %v278 = vunpack.c.h.b16 %v142
    %v279 = vunpack.c.l.b16 %v143
    %v280 = vunpack.c.h.b16 %v143
    %v281 = vunpack.c.l.b16 %v144
    %v282 = vunpack.c.h.b16 %v144
    %v283 = vunpack.c.l.b16 %v145
    %v284 = vunpack.c.h.b16 %v145
    %v285 = vunpack.c.l.b16 %v146
    %v286 = vunpack.c.h.b16 %v146
    %v287 = vunpack.c.l.b16 %v147
    %v288 = vunpack.c.h.b16 %v147
    %v289 = vunpack.c.l.b16 %v148
    %v290 = vunpack.c.h.b16 %v148
    %v291 = vunpack.c.l.b16 %v149
    %v292 = vunpack.c.h.b16 %v149
    %v293 = vunpack.c.l.b16 %v150
    %v294 = vunpack.c.h.b16 %v150
    %v295 = vunpack.c.l.b16 %v151
    %v296 = vunpack.c.h.b16 %v151
    %v297 = vunpack.c.l.b16 %v152
    %v298 = vunpack.c.h.b16 %v152
    %v299 = vunpack.c.l.b16 %v153
    %v300 = vunpack.c.h.b16 %v153
    %v301 = vpack.c.b16 %v223, %v221
    %v302 = vpack.c.b16 %v224, %v222
    %v303 = vpack.c.b16 %v227, %v225
    %v304 = vpack.c.b16 %v228, %v226
    %v305 = vpack.c.b16 %v231, %v229
    %v306 = vpack.c.b16 %v232, %v230
    %v307 = vpack.c.b16 %v235, %v233
    %v308 = vpack.c.b16 %v236, %v234
    %v309 = vpack.c.b16 %v239, %v237
    %v310 = vpack.c.b16 %v240, %v238
    %v311 = vpack.c.b16 %v243, %v241
    %v312 = vpack.c.b16 %v244, %v242
    %v313 = vpack.c.b16 %v247, %v245
    %v314 = vpack.c.b16 %v248, %v246
    %v315 = vpack.c.b16 %v251, %v249
    %v316 = vpack.c.b16 %v252, %v250
    %v317 = vpack.c.b16 %v255, %v253
    %v318 = vpack.c.b16 %v256, %v254
    %v319 = vpack.c.b16 %v259, %v257
    %v320 = vpack.c.b16 %v260, %v258
    %v321 = vpack.c.b16 %v263, %v261
    %v322 = vpack.c.b16 %v264, %v262
    %v323 = vpack.c.b16 %v267, %v265
    %v324 = vpack.c.b16 %v268, %v266
    %v325 = vpack.c.b16 %v271, %v269
    %v326 = vpack.c.b16 %v272, %v270
    %v327 = vpack.c.b16 %v275, %v273
    %v328 = vpack.c.b16 %v276, %v274
    %v329 = vpack.c.b16 %v279, %v277
    %v330 = vpack.c.b16 %v280, %v278
    %v331 = vpack.c.b16 %v283, %v281
    %v332 = vpack.c.b16 %v284, %v282
    %v333 = vpack.c.b16 %v287, %v285
    %v334 = vpack.c.b16 %v288, %v286
    %v335 = vpack.c.b16 %v291, %v289
    %v336 = vpack.c.b16 %v292, %v290
    %v337 = vpack.c.b16 %v295, %v293
    %v338 = vpack.c.b16 %v296, %v294
    %v339 = vpack.c.b16 %v299, %v297
    %v340 = vpack.c.b16 %v300, %v298
    %vm381 = vcmask 523264
    %v382 = vsel %vm381, %v177, 0
    %384 = vmatprep.subr.bf16.mxu0 %v302
    %385 = vmatpush1.bf16.msra.mxu0 %v301
    %386 = vmatprep.subr.bf16.mxu0 %v304
    %387 = vmatpush1.bf16.msra.mxu0 %v303
    %388 = vmatprep.subr.bf16.mxu0 %v306
    %389 = vmatpush1.bf16.msra.mxu0 %v305
    %390 = vmatprep.subr.bf16.mxu0 %v308
    %391 = vmatpush1.bf16.msra.mxu0 %v307
    %392 = vmatprep.subr.bf16.mxu0 %v310
    %393 = vmatpush1.bf16.msra.mxu0 %v309
    %394 = vmatprep.subr.bf16.mxu0 %v312
    %395 = vmatpush1.bf16.msra.mxu0 %v311
    %396 = vmatprep.subr.bf16.mxu0 %v314
    %397 = vmatpush1.bf16.msra.mxu0 %v313
    %398 = vmatprep.subr.bf16.mxu0 %v316
    %399 = vmatpush1.bf16.msra.mxu0 %v315
    %400 = vmatprep.subr.bf16.mxu0 %v318
    %401 = vmatpush1.bf16.msra.mxu0 %v317
    %402 = vmatprep.subr.bf16.mxu0 %v320
    %403 = vmatpush1.bf16.msra.mxu0 %v319
    %404 = vmatprep.subr.bf16.mxu0 %v322
    %405 = vmatpush1.bf16.msra.mxu0 %v321
    %406 = vmatprep.subr.bf16.mxu0 %v324
    %407 = vmatpush1.bf16.msra.mxu0 %v323
    %408 = vmatprep.subr.bf16.mxu0 %v326
    %409 = vmatpush1.bf16.msra.mxu0 %v325
    %410 = vmatprep.subr.bf16.mxu0 %v328
    %411 = vmatpush1.bf16.msra.mxu0 %v327
    %412 = vmatprep.subr.bf16.mxu0 %v330
    %413 = vmatpush1.bf16.msra.mxu0 %v329
    %414 = vmatprep.subr.bf16.mxu0 %v332
    %415 = vmatpush1.bf16.msra.mxu0 %v331
    %416 = vmatprep.mubr.f32.mxu0 %v178
    %417 = vmatmul.mubr.f32.gmra.mrb[0].mxu0 %v170
    %v418 = vpop.f32.mrb[0].mxu0
    %v419 = vadd.f32 %v157, %v418
    %v420 = vpop.f32.mrb[0].mxu0
    %v421 = vadd.f32 %v161, %v420
    %422 = vdwg.mxu0
    %423 = vmatprep.subr.bf16.mxu0 %v334
    %424 = vmatpush1.bf16.msra.mxu0 %v333
    %425 = vmatprep.subr.bf16.mxu0 %v336
    %426 = vmatpush1.bf16.msra.mxu0 %v335
    %427 = vmatprep.subr.bf16.mxu0 %v338
    %428 = vmatpush1.bf16.msra.mxu0 %v337
    %429 = vmatprep.subr.bf16.mxu0 %v340
    %430 = vmatpush1.bf16.msra.mxu0 %v339
    %431 = vmatprep.subr.bf16.mxu0 0
    %432 = vmatpush1.bf16.msra.mxu0 0
    %433 = vmatprep.subr.bf16.mxu0 0
    %434 = vmatpush1.bf16.msra.mxu0 0
    %435 = vmatprep.subr.bf16.mxu0 0
    %436 = vmatpush1.bf16.msra.mxu0 0
    %437 = vmatprep.subr.bf16.mxu0 0
    %438 = vmatpush1.bf16.msra.mxu0 0
    %439 = vmatprep.subr.bf16.mxu0 0
    %440 = vmatpush1.bf16.msra.mxu0 0
    %441 = vmatprep.subr.bf16.mxu0 0
    %442 = vmatpush1.bf16.msra.mxu0 0
    %443 = vmatprep.subr.bf16.mxu0 0
    %444 = vmatpush1.bf16.msra.mxu0 0
    %445 = vmatprep.subr.bf16.mxu0 0
    %446 = vmatpush1.bf16.msra.mxu0 0
    %447 = vmatprep.subr.bf16.mxu0 0
    %448 = vmatpush1.bf16.msra.mxu0 0
    %449 = vmatprep.subr.bf16.mxu0 0
    %450 = vmatpush1.bf16.msra.mxu0 0
    %451 = vmatprep.subr.bf16.mxu0 0
    %452 = vmatpush1.bf16.msra.mxu0 0
    %453 = vmatprep.subr.bf16.mxu0 0
    %454 = vmatpush1.bf16.msra.mxu0 0
    %455 = vmatprep.mubr.f32.mxu0 0.0
    %456 = vmatmul.mubr.f32.gmra.mrb[0].mxu0 %v382
    %v457 = vpop.f32.mrb[0].mxu0
    %v458 = vadd.f32 %v419, %v457
    %v459 = vpop.f32.mrb[0].mxu0
    %v460 = vadd.f32 %v421, %v459
    %461 = vdwg.mxu0
    %v462 = vmax.f32 %v458, 0.0
    %v463 = vmax.f32 %v460, 0.0
    %v464 = vld [vmem:[#allocation5 + $0x140] sm:$0xff]
    %v465 = vld [vmem:[#allocation5 + $0x148] sm:$0xff]
    %v466 = vld [vmem:[#allocation5 + $0x150] sm:$0xff]
    %v467 = vld [vmem:[#allocation5 + $0x158] sm:$0xff]
    %v468 = vld [vmem:[#allocation5 + $0x160] sm:$0xff]
    %v469 = vld [vmem:[#allocation5 + $0x168] sm:$0xff]
    %v470 = vld [vmem:[#allocation5 + $0x170] sm:$0xff]
    %v471 = vld [vmem:[#allocation5 + $0x178] sm:$0xff]
    %v472 = vld [vmem:[#allocation5 + $0x180] sm:$0xff]
    %v473 = vld [vmem:[#allocation5 + $0x188] sm:$0xff]
    %v474 = vld [vmem:[#allocation5 + $0x190] sm:$0xff]
    %v475 = vld [vmem:[#allocation5 + $0x198] sm:$0xff]
    %v476 = vld [vmem:[#allocation5 + $0x1a0] sm:$0xff]
    %v477 = vld [vmem:[#allocation5 + $0x1a8] sm:$0xff]
    %v478 = vld [vmem:[#allocation5 + $0x1b0] sm:$0xff]
    %v479 = vld [vmem:[#allocation5 + $0x1b8] sm:$0xff]
    %v480 = vld [vmem:[#allocation5 + $0x1c0] sm:$0xff]
    %v481 = vld [vmem:[#allocation5 + $0x1c8] sm:$0xff]
    %v482 = vld [vmem:[#allocation5 + $0x1d0] sm:$0xff]
    %v483 = vld [vmem:[#allocation5 + $0x1d8] sm:$0xff]
    %v484 = vlaneseq
    %v485 = vshrl.u32 %v484, 7
    %v486 = vsub.s32 2, %v485
    %v487 = vrot.slane %v41, %v486
    %v508 = vunpack.c.l.b16 %v464
    %v509 = vunpack.c.h.b16 %v464
    %v510 = vunpack.c.l.b16 %v465
    %v511 = vunpack.c.h.b16 %v465
    %v512 = vunpack.c.l.b16 %v466
    %v513 = vunpack.c.h.b16 %v466
    %v514 = vunpack.c.l.b16 %v467
    %v515 = vunpack.c.h.b16 %v467
    %v516 = vunpack.c.l.b16 %v468
    %v517 = vunpack.c.h.b16 %v468
    %v518 = vunpack.c.l.b16 %v469
    %v519 = vunpack.c.h.b16 %v469
    %v520 = vunpack.c.l.b16 %v470
    %v521 = vunpack.c.h.b16 %v470
    %v522 = vunpack.c.l.b16 %v471
    %v523 = vunpack.c.h.b16 %v471
    %v524 = vunpack.c.l.b16 %v472
    %v525 = vunpack.c.h.b16 %v472
    %v526 = vunpack.c.l.b16 %v473
    %v527 = vunpack.c.h.b16 %v473
    %v528 = vunpack.c.l.b16 %v474
    %v529 = vunpack.c.h.b16 %v474
    %v530 = vunpack.c.l.b16 %v475
    %v531 = vunpack.c.h.b16 %v475
    %v532 = vunpack.c.l.b16 %v476
    %v533 = vunpack.c.h.b16 %v476
    %v534 = vunpack.c.l.b16 %v477
    %v535 = vunpack.c.h.b16 %v477
    %v536 = vunpack.c.l.b16 %v478
    %v537 = vunpack.c.h.b16 %v478
    %v538 = vunpack.c.l.b16 %v479
    %v539 = vunpack.c.h.b16 %v479
    %v540 = vunpack.c.l.b16 %v480
    %v541 = vunpack.c.h.b16 %v480
    %v542 = vunpack.c.l.b16 %v481
    %v543 = vunpack.c.h.b16 %v481
    %v544 = vunpack.c.l.b16 %v482
    %v545 = vunpack.c.h.b16 %v482
    %v546 = vunpack.c.l.b16 %v483
    %v547 = vunpack.c.h.b16 %v483
    %v548 = vpack.c.b16 %v510, %v508
    %v549 = vpack.c.b16 %v511, %v509
    %v550 = vpack.c.b16 %v514, %v512
    %v551 = vpack.c.b16 %v515, %v513
    %v552 = vpack.c.b16 %v518, %v516
    %v553 = vpack.c.b16 %v519, %v517
    %v554 = vpack.c.b16 %v522, %v520
    %v555 = vpack.c.b16 %v523, %v521
    %v556 = vpack.c.b16 %v526, %v524
    %v557 = vpack.c.b16 %v527, %v525
    %v558 = vpack.c.b16 %v530, %v528
    %v559 = vpack.c.b16 %v531, %v529
    %v560 = vpack.c.b16 %v534, %v532
    %v561 = vpack.c.b16 %v535, %v533
    %v562 = vpack.c.b16 %v538, %v536
    %v563 = vpack.c.b16 %v539, %v537
    %v564 = vpack.c.b16 %v542, %v540
    %v565 = vpack.c.b16 %v543, %v541
    %v566 = vpack.c.b16 %v546, %v544
    %v567 = vpack.c.b16 %v547, %v545
    %vm588 = vcmask 261120
    %v590 = vsel %vm588, %v463, 0
    %592 = vmatprep.subr.bf16.mxu0 %v549
    %593 = vmatpush1.bf16.msra.mxu0 %v548
    %594 = vmatprep.subr.bf16.mxu0 %v551
    %595 = vmatpush1.bf16.msra.mxu0 %v550
    %596 = vmatprep.subr.bf16.mxu0 %v553
    %597 = vmatpush1.bf16.msra.mxu0 %v552
    %598 = vmatprep.subr.bf16.mxu0 %v555
    %599 = vmatpush1.bf16.msra.mxu0 %v554
    %600 = vmatprep.subr.bf16.mxu0 %v557
    %601 = vmatpush1.bf16.msra.mxu0 %v556
    %602 = vmatprep.subr.bf16.mxu0 %v559
    %603 = vmatpush1.bf16.msra.mxu0 %v558
    %604 = vmatprep.subr.bf16.mxu0 %v561
    %605 = vmatpush1.bf16.msra.mxu0 %v560
    %606 = vmatprep.subr.bf16.mxu0 %v563
    %607 = vmatpush1.bf16.msra.mxu0 %v562
    %608 = vmatprep.subr.bf16.mxu0 %v565
    %609 = vmatpush1.bf16.msra.mxu0 %v564
    %610 = vmatprep.subr.bf16.mxu0 %v567
    %611 = vmatpush1.bf16.msra.mxu0 %v566
    %612 = vmatprep.subr.bf16.mxu0 0
    %613 = vmatpush1.bf16.msra.mxu0 0
    %614 = vmatprep.subr.bf16.mxu0 0
    %615 = vmatpush1.bf16.msra.mxu0 0
    %616 = vmatprep.subr.bf16.mxu0 0
    %617 = vmatpush1.bf16.msra.mxu0 0
    %618 = vmatprep.subr.bf16.mxu0 0
    %619 = vmatpush1.bf16.msra.mxu0 0
    %620 = vmatprep.subr.bf16.mxu0 0
    %621 = vmatpush1.bf16.msra.mxu0 0
    %622 = vmatprep.subr.bf16.mxu0 0
    %623 = vmatpush1.bf16.msra.mxu0 0
    %624 = vmatprep.mubr.f32.mxu0 %v590
    %625 = vmatmul.mubr.f32.gmra.mrb[0].mxu0 %v462
    %v626 = vpop.f32.mrb[0].mxu0
    %v627 = vadd.f32 %v487, %v626
    %v628 = vpop.f32.mrb[0].mxu0
    %629 = vdwg.mxu0
    %v630 = vmax.f32 %v627, 0.0
    %v631 = vld [vmem:[#allocation5 + $0x1e0] sm:$0xff]
    %v632 = vld [vmem:[#allocation5 + $0x1e8] sm:$0xff]
    %v633 = vld [vmem:[#allocation5 + $0x1f0] sm:$0xff]
    %v634 = vld [vmem:[#allocation5 + $0x1f8] sm:$0xff]
    %v635 = vld [vmem:[#allocation5 + $0x200] sm:$0xff]
    %v636 = vld [vmem:[#allocation5 + $0x208] sm:$0xff]
    %v637 = vld [vmem:[#allocation5 + $0x210] sm:$0xff]
    %v638 = vld [vmem:[#allocation5 + $0x218] sm:$0xff]
    %v639 = vld [vmem:[#allocation5 + $0x220] sm:$0xff]
    %v640 = vld [vmem:[#allocation5 + $0x228] sm:$0xff]
    %v641 = vlaneseq
    %v642 = vshrl.u32 %v641, 7
    %v643 = vsub.s32 3, %v642
    %v644 = vrot.slane %v41, %v643
    %v645 = vlaneseq
    %v646 = vshrl.u32 %v645, 7
    %v647 = vsub.s32 3, %v646
    %v648 = vrot.slane %v42, %v647
    %v659 = vunpack.c.l.b16 %v631
    %v660 = vunpack.c.h.b16 %v631
    %v661 = vunpack.c.l.b16 %v632
    %v662 = vunpack.c.h.b16 %v632
    %v663 = vunpack.c.l.b16 %v633
    %v664 = vunpack.c.h.b16 %v633
    %v665 = vunpack.c.l.b16 %v634
    %v666 = vunpack.c.h.b16 %v634
    %v667 = vunpack.c.l.b16 %v635
    %v668 = vunpack.c.h.b16 %v635
    %v669 = vunpack.c.l.b16 %v636
    %v670 = vunpack.c.h.b16 %v636
    %v671 = vunpack.c.l.b16 %v637
    %v672 = vunpack.c.h.b16 %v637
    %v673 = vunpack.c.l.b16 %v638
    %v674 = vunpack.c.h.b16 %v638
    %v675 = vunpack.c.l.b16 %v639
    %v676 = vunpack.c.h.b16 %v639
    %v677 = vunpack.c.l.b16 %v640
    %v678 = vunpack.c.h.b16 %v640
    %v679 = vpack.c.b16 %v661, %v659
    %v680 = vpack.c.b16 %v662, %v660
    %v681 = vpack.c.b16 %v665, %v663
    %v682 = vpack.c.b16 %v666, %v664
    %v683 = vpack.c.b16 %v669, %v667
    %v684 = vpack.c.b16 %v670, %v668
    %v685 = vpack.c.b16 %v673, %v671
    %v686 = vpack.c.b16 %v674, %v672
    %v687 = vpack.c.b16 %v677, %v675
    %v688 = vpack.c.b16 %v678, %v676
    %vm699 = vcmask 654336
    %v701 = vsel %vm699, %v630, 0
    %703 = vmatprep.subr.bf16.mxu0 %v680
    %704 = vmatpush1.bf16.msra.mxu0 %v679
    %705 = vmatprep.subr.bf16.mxu0 %v682
    %706 = vmatpush1.bf16.msra.mxu0 %v681
    %707 = vmatprep.subr.bf16.mxu0 %v684
    %708 = vmatpush1.bf16.msra.mxu0 %v683
    %709 = vmatprep.subr.bf16.mxu0 %v686
    %710 = vmatpush1.bf16.msra.mxu0 %v685
    %711 = vmatprep.subr.bf16.mxu0 %v688
    %712 = vmatpush1.bf16.msra.mxu0 %v687
    %713 = vmatprep.subr.bf16.mxu0 0
    %714 = vmatpush1.bf16.msra.mxu0 0
    %715 = vmatprep.subr.bf16.mxu0 0
    %716 = vmatpush1.bf16.msra.mxu0 0
    %717 = vmatprep.subr.bf16.mxu0 0
    %718 = vmatpush1.bf16.msra.mxu0 0
    %719 = vmatprep.subr.bf16.mxu0 0
    %720 = vmatpush1.bf16.msra.mxu0 0
    %721 = vmatprep.subr.bf16.mxu0 0
    %722 = vmatpush1.bf16.msra.mxu0 0
    %723 = vmatprep.subr.bf16.mxu0 0
    %724 = vmatpush1.bf16.msra.mxu0 0
    %725 = vmatprep.subr.bf16.mxu0 0
    %726 = vmatpush1.bf16.msra.mxu0 0
    %727 = vmatprep.subr.bf16.mxu0 0
    %728 = vmatpush1.bf16.msra.mxu0 0
    %729 = vmatprep.subr.bf16.mxu0 0
    %730 = vmatpush1.bf16.msra.mxu0 0
    %731 = vmatprep.subr.bf16.mxu0 0
    %732 = vmatpush1.bf16.msra.mxu0 0
    %733 = vmatprep.subr.bf16.mxu0 0
    %734 = vmatpush1.bf16.msra.mxu0 0
    %735 = vmatprep.mubr.f32.mxu0 0.0
    %736 = vmatmul.mubr.f32.gmra.mrb[0].mxu0 %v701
    %v737 = vpop.f32.mrb[0].mxu0
    %v738 = vadd.f32 %v644, %v737
    %v739 = vpop.f32.mrb[0].mxu0
    %v740 = vadd.f32 %v648, %v739
    %741 = vdwg.mxu0
    %v742 = vmax.f32 %v738, 0.0
    %v743 = vmax.f32 %v740, 0.0
    %v744 = vlaneseq
    %v745 = vshrl.u32 %v744, 7
    %v746 = vsub.s32 0, %v745
    %v747 = vrot.slane %v41, %v746
    %v748 = vlaneseq
    %v749 = vshrl.u32 %v748, 7
    %v750 = vsub.s32 0, %v749
    %v751 = vrot.slane %v42, %v750
    %v752 = vmul.f32 %v742, %v747
    %v753 = vmul.f32 %v743, %v751
    %v754 = vsel %vm64, %v752, 0.0
    %v755 = vsel %vm64, %v753, 0.0
    %v756 = vadd.f32 %v754, %v755
    %757 = vadd.xlane.f32.xlu0 %v756
    %v758 = vpop.xlane.xlu0 %757
    %v759 = vtanh.pop %v758
    %v760 = vsel %vm64, %v738, -inf
    %v761 = vrot.slane %v760, 4
    %v762 = vmax.f32 %v760, %v761
    %v763 = vrot.slane %v762, 2
    %v764 = vmax.f32 %v762, %v763
    %v765 = vrot.slane %v764, 1
    %v766 = vmax.f32 %v764, %v765
    %v767 = vsub.f32 %v738, %v766
    %v768 = vmul.f32 %v767, 1.442695
    %v769 = vpow.pop %v768
    %v770 = vsel %vm64, %v769, 0.0
    %v771 = vrot.slane %v770, 4
    %v772 = vadd.f32 %v770, %v771
    %v773 = vrot.slane %v772, 2
    %v774 = vadd.f32 %v772, %v773
    %v775 = vrot.slane %v774, 1
    %v776 = vadd.f32 %v774, %v775
    %v777 = vlog2.pop %v776
    %v778 = vmul.f32 %v777, 0.6931472
    %v779 = vadd.f32 %v778, %v766
    %v780 = vsub.f32 %v738, %v779
    %v781 = vlaneseq
    %v782 = vand.u32 %v781, 127
    %vm783 = vcmp.lt.s32.totalorder %v782, 5
    %vm784 = vcmp.eq.s32.totalorder %v782, 5
    %v785 = vsel %vm784, %v759, 0.0
    %v786 = vsel %vm783, %v780, %v785
    %787 = vst [vmem:[#allocation7] sm:$0x3] %v786
    // Predicated region
    $region18: #{tpu_custom_call.1} parent=1 // pred_check
      _
    $region19: #{tpu_custom_call.1} parent=1 // pred_check_branch
      %789 = sbr.rel (0) target = $region21
    $region20: #{tpu_custom_call.1} parent=1 // pred_region
      %s791 = ssub.s32 32, 32
      %792 = vsyncadd [#allocation4], %s791
      %s794 = sshll.u32 [#allocation7], 4
      %s795 = int_to_ptr.vmem [resolvable:$true] %s794
      %797 = dma.vmem_to_hbm [thread:$0]  %s795, 32, %s2, [#allocation4]
    $region21: #{tpu_custom_call.1} parent=1 // pred_fallthru
      _
    // Predicated region
    $region22: #{tpu_custom_call.1} parent=1 // pred_check
      _
    $region23: #{tpu_custom_call.1} parent=1 // pred_check_branch
      %799 = sbr.rel (0) target = $region25
    $region24: #{tpu_custom_call.1} parent=1 // pred_region
      %800 = dma.done [#allocation4], 32
    $region25: #{tpu_custom_call.1} parent=1 // pred_fallthru
      _
    %801 = vsyncpa [#allocation3], 1
    %802 = vsyncpa [#allocation6], 1
    %803 = vsyncpa [#allocation4], 1

</llo_original>
